<compile_context>
chip_gen: v5e
topology: v5e:2x2
jax: 0.10.0
libtpu: 0.0.40
codegen_flags: <defaults>
</compile_context>

<pallas_src>
import functools

import jax
import jax.numpy as jnp
from jax.experimental import pallas as pl
from jax.experimental.pallas import tpu as pltpu


_VMEM_LIMIT = 48 * 1024 * 1024   # v7x-safe budget (64 MiB physical VMEM).
_FAST_PATH_BYTES = 256 * 1024    # single-block path for tiny problems.
_MAX_SINGLE_K = 1024             # collapse the K grid axis when K_pad <= this.


def _round_up(x, m):
    return ((x + m - 1) // m) * m


def _pick_tile(dim, candidates, unit):
    """Largest candidate that is a multiple of `unit` and divides `dim`."""
    for c in candidates:
        if c <= dim and c % unit == 0 and dim % c == 0:
            return c
    return unit  # `dim` is always a multiple of `unit` by construction.


def _split_tile(dim, tile, unit):
    """Largest multiple of `unit` that divides `dim` and is < `tile`."""
    c = tile - unit
    while c >= unit:
        if dim % c == 0:
            return c
        c -= unit
    return tile


def _embed_kernel(x_ref, w_ref, b_ref, o_ref):
    """One (tm, tn) output block; all of K in a single MXU pass."""
    acc = jnp.dot(x_ref[...].astype(w_ref.dtype), w_ref[...],
                  preferred_element_type=jnp.float32)
    o_ref[...] = (acc + b_ref[...]).astype(o_ref.dtype)


def _embed_kernel_acc(x_ref, w_ref, b_ref, o_ref, acc_ref):
    """(tm, tn) output block with a K reduction axis (innermost grid dim)."""
    k = pl.program_id(2)

    @pl.when(k == 0)
    def _():
        acc_ref[...] = jnp.zeros_like(acc_ref)

    acc_ref[...] += jnp.dot(x_ref[...].astype(w_ref.dtype), w_ref[...],
                            preferred_element_type=jnp.float32)

    @pl.when(k == pl.num_programs(2) - 1)
    def _():
        # Bias rides the VPU slot in the writeback phase only.
        o_ref[...] = (acc_ref[...] + b_ref[...]).astype(o_ref.dtype)


def prepare_embedding_params(weight, bias, *, use_bf16=True):
    """One-time (init-time) cast + lane padding of the embedding parameters.

    weight: [D_in, E], bias: [E] or [1, E]
      -> w_pad [K_pad, E_pad] (bf16 by default), b_pad [1, E_pad] (f32).
    Doing this once means the per-call forward never re-writes a padded/cast
    copy of W to HBM.
    """
    K, E = weight.shape
    K_pad = _round_up(K, 128)
    E_pad = _round_up(E, 128)
    w_dtype = jnp.bfloat16 if use_bf16 else weight.dtype
    w_pad = jnp.zeros((K_pad, E_pad), w_dtype).at[:K, :E].set(
        weight.astype(w_dtype))
    b_pad = jnp.zeros((1, E_pad), jnp.float32).at[:, :E].set(
        jnp.reshape(bias, (1, -1)).astype(jnp.float32))
    return w_pad, b_pad


@functools.partial(jax.jit, static_argnames=("embedding_dim",))
def embedding_forward(value, w_pad, b_pad, *, embedding_dim):
    """value: [B, D_in]; returns value @ W + b as [B, embedding_dim]."""
    B, K = value.shape
    K_pad, E_pad = w_pad.shape
    assert K <= K_pad and embedding_dim <= E_pad
    out_dtype = value.dtype
    # Sublane multiple keyed off the *actual* activation/output dtype.
    sub = 16 if value.dtype == jnp.bfloat16 else 8

    footprint = (B * K_pad * value.dtype.itemsize
                 + K_pad * E_pad * w_pad.dtype.itemsize
                 + B * E_pad * out_dtype.itemsize)

    if footprint <= _FAST_PATH_BYTES and K_pad <= _MAX_SINGLE_K:
        # ---- Fast path: single block, no grid pipeline, no padding of B. ----
        x = value
        if K != K_pad:
            x = jnp.zeros((B, K_pad), value.dtype).at[:, :K].set(value)
        out = pl.pallas_call(
            _embed_kernel,
            out_shape=jax.ShapeDtypeStruct((B, E_pad), out_dtype),
            grid=(1,),
            in_specs=[
                pl.BlockSpec((B, K_pad), lambda i: (0, 0)),
                pl.BlockSpec((K_pad, E_pad), lambda i: (0, 0)),
                pl.BlockSpec((1, E_pad), lambda i: (0, 0)),
            ],
            out_specs=pl.BlockSpec((B, E_pad), lambda i: (0, 0)),
            compiler_params=pltpu.CompilerParams(
                vmem_limit_bytes=_VMEM_LIMIT),
        )(x, w_pad, b_pad)
        if out.shape != (B, embedding_dim):
            out = out[:, :embedding_dim]
        return out

    # ---- Tiled path. ----
    B_pad = _round_up(B, sub)
    tm = _pick_tile(B_pad, (256, 128, 64, 32, 16, 8), sub)
    tn = _pick_tile(E_pad, (512, 256, 128), 128)

    # Ensure at least one parallel axis has >= 2 blocks (v7x has 2 TCs).
    if (B_pad // tm) * (E_pad // tn) == 1:
        if E_pad > 128:
            tn = _split_tile(E_pad, tn, 128)
        elif B_pad > sub:
            tm = _split_tile(B_pad, tm, sub)

    x = value
    if (B, K) != (B_pad, K_pad):
        # Zero padding is exact for the matmul; padded rows sliced off below.
        x = jnp.zeros((B_pad, K_pad), value.dtype).at[:B, :K].set(value)

    if K_pad <= _MAX_SINGLE_K:
        # Single MXU pass over K: no accumulator, no init/epilogue branches.
        out = pl.pallas_call(
            _embed_kernel,
            out_shape=jax.ShapeDtypeStruct((B_pad, E_pad), out_dtype),
            grid=(B_pad // tm, E_pad // tn),
            in_specs=[
                pl.BlockSpec((tm, K_pad), lambda i, j: (i, 0)),
                pl.BlockSpec((K_pad, tn), lambda i, j: (0, j)),
                pl.BlockSpec((1, tn), lambda i, j: (0, j)),
            ],
            out_specs=pl.BlockSpec((tm, tn), lambda i, j: (i, j)),
            compiler_params=pltpu.CompilerParams(
                dimension_semantics=("parallel", "parallel"),
                vmem_limit_bytes=_VMEM_LIMIT),
        )(x, w_pad, b_pad)
    else:
        tk = _pick_tile(K_pad, (512, 256), 128)
        out = pl.pallas_call(
            _embed_kernel_acc,
            out_shape=jax.ShapeDtypeStruct((B_pad, E_pad), out_dtype),
            grid=(B_pad // tm, E_pad // tn, K_pad // tk),
            in_specs=[
                pl.BlockSpec((tm, tk), lambda i, j, k: (i, k)),
                pl.BlockSpec((tk, tn), lambda i, j, k: (k, j)),
                pl.BlockSpec((1, tn), lambda i, j, k: (0, j)),
            ],
            out_specs=pl.BlockSpec((tm, tn), lambda i, j, k: (i, j)),
            scratch_shapes=[pltpu.VMEM((tm, tn), jnp.float32)],
            compiler_params=pltpu.CompilerParams(
                dimension_semantics=("parallel", "parallel", "arbitrary"),
                vmem_limit_bytes=_VMEM_LIMIT),
        )(x, w_pad, b_pad)

    if out.shape != (B, embedding_dim):
        out = out[:B, :embedding_dim]
    return out


def _check(value, weight, bias, atol, rtol):
    E = weight.shape[1]
    w_pad, b_pad = prepare_embedding_params(weight, bias, use_bf16=True)
    out = jax.block_until_ready(
        embedding_forward(value, w_pad, b_pad, embedding_dim=E))
    assert out.shape == (value.shape[0], E), out.shape
    assert out.dtype == value.dtype
    out_f32 = out.astype(jnp.float32)
    # Tight reference: identical bf16 input rounding, f32 accumulation.
    ref_bf16 = jnp.dot(
        value.astype(jnp.bfloat16).astype(jnp.float32),
        weight.astype(jnp.bfloat16).astype(jnp.float32),
        preferred_element_type=jnp.float32,
    ) + bias
    assert jnp.allclose(out_f32, ref_bf16, atol=atol, rtol=rtol), \
        "bf16-ref mismatch"
    # Loose sanity check against the full-precision reference.
    ref_f32 = value @ weight + bias
    assert jnp.allclose(out_f32, ref_f32, atol=5e-2, rtol=5e-2), \
        "f32-ref mismatch"


if __name__ == "__main__":
    key = jax.random.PRNGKey(0)
    keys = jax.random.split(key, 9)

    # Case 1: module-scale shapes -> single-block fast path (no grid, no pad
    # of B, weight pre-padded/cast once at init time).
    batch, in_dim, embedding_dim = 8, 32, 32
    value = jax.random.normal(keys[0], (batch, in_dim), dtype=jnp.float32)
    weight = jax.random.normal(keys[1], (in_dim, embedding_dim),
                               dtype=jnp.float32) * 0.05
    bias = jax.random.normal(keys[2], (1, embedding_dim),
                             dtype=jnp.float32) * 0.01
    _check(value, weight, bias, atol=1e-4, rtol=1e-4)

    # Case 2: tiled path with the K axis collapsed (single MXU pass over K),
    # tiles chosen as divisors of the padded dims (tn=128 -> 3 N blocks).
    batch2, in_dim2, embedding_dim2 = 16, 512, 384
    value2 = jax.random.normal(keys[3], (batch2, in_dim2), dtype=jnp.float32)
    weight2 = jax.random.normal(keys[4], (in_dim2, embedding_dim2),
                                dtype=jnp.float32) * 0.05
    bias2 = jax.random.normal(keys[5], (1, embedding_dim2),
                              dtype=jnp.float32) * 0.01
    _check(value2, weight2, bias2, atol=1e-3, rtol=1e-3)

    # Case 3: D_in > 1024 -> exercises the K-reduction kernel with the f32
    # accumulator and the (1,1)-grid megacore split (tn 256 -> 128).
    batch3, in_dim3, embedding_dim3 = 16, 1536, 256
    value3 = jax.random.normal(keys[6], (batch3, in_dim3), dtype=jnp.float32)
    weight3 = jax.random.normal(keys[7], (in_dim3, embedding_dim3),
                                dtype=jnp.float32) * 0.05
    bias3 = jax.random.normal(keys[8], (1, embedding_dim3),
                              dtype=jnp.float32) * 0.01
    _check(value3, weight3, bias3, atol=2e-3, rtol=1e-3)

    print("KERNEL_OK")
</pallas_src>

<mosaic_0001>
module attributes {stable_mosaic.version = 11 : i64} {
  func.func @_embed_kernel(%arg0: i32, %arg1: memref<8x128xf32, #tpu.memory_space<vmem>>, %arg2: memref<128x128xbf16, #tpu.memory_space<vmem>>, %arg3: memref<1x128xf32, #tpu.memory_space<vmem>>, %arg4: memref<8x128xf32, #tpu.memory_space<vmem>>) attributes {dimension_semantics = [#tpu.dimension_semantics<arbitrary>], iteration_bounds = array<i64: 1>, scalar_prefetch = 0 : i64, scratch_operands = 0 : i64, tpu.core_type = #tpu.core_type<tc>, window_params = [{pipeline_mode = #tpu.pipeline_mode<synchronous>, transform_indices = @transform_0, window_bounds = array<i64: 8, 128>}, {pipeline_mode = #tpu.pipeline_mode<synchronous>, transform_indices = @transform_1, window_bounds = array<i64: 128, 128>}, {pipeline_mode = #tpu.pipeline_mode<synchronous>, transform_indices = @transform_2, window_bounds = array<i64: 1, 128>}, {pipeline_mode = #tpu.pipeline_mode<synchronous>, transform_indices = @transform_3, window_bounds = array<i64: 8, 128>}]} {
    %c0 = arith.constant 0 : index
    %c0_0 = arith.constant 0 : index
    %0 = vector.load %arg1[%c0, %c0_0] : memref<8x128xf32, #tpu.memory_space<vmem>>, vector<8x128xf32>
    %1 = arith.truncf %0 : vector<8x128xf32> to vector<8x128xbf16>
    %c0_1 = arith.constant 0 : index
    %c0_2 = arith.constant 0 : index
    %2 = vector.load %arg2[%c0_1, %c0_2] : memref<128x128xbf16, #tpu.memory_space<vmem>>, vector<128x128xbf16>
    %cst = arith.constant dense<0.000000e+00> : vector<8x128xf32>
    %3 = tpu.matmul %1, %2, %cst {dimension_numbers = #tpu.dot_dimension_numbers<[1], [0], [0], [1], [0, 0, 1, 1], [], []>} : vector<8x128xbf16>, vector<128x128xbf16>, vector<8x128xf32> -> vector<8x128xf32>
    %c0_3 = arith.constant 0 : index
    %c0_4 = arith.constant 0 : index
    %4 = vector.load %arg3[%c0_3, %c0_4] : memref<1x128xf32, #tpu.memory_space<vmem>>, vector<1x128xf32>
    %5 = vector.broadcast %4 : vector<1x128xf32> to vector<8x128xf32>
    %6 = arith.addf %3, %5 : vector<8x128xf32>
    %c0_5 = arith.constant 0 : index
    %c0_6 = arith.constant 0 : index
    %7 = vector.load %arg4[%c0_5, %c0_6] : memref<8x128xf32, #tpu.memory_space<vmem>>, vector<8x128xf32>
    tpu.vector_store %arg4[%c0_5, %c0_6], %6 {strides = array<i32>} : memref<8x128xf32, #tpu.memory_space<vmem>>, vector<8x128xf32>,
    return
  }
  func.func @transform_0(%arg0: i32) -> (i32, i32) {
    %c0_i32 = arith.constant 0 : i32
    %c0_i32_0 = arith.constant 0 : i32
    %c0_i32_1 = arith.constant 0 : i32
    return %c0_i32, %c0_i32_0 : i32, i32
  }
  func.func @transform_1(%arg0: i32) -> (i32, i32) {
    %c0_i32 = arith.constant 0 : i32
    %c0_i32_0 = arith.constant 0 : i32
    %c0_i32_1 = arith.constant 0 : i32
    return %c0_i32, %c0_i32_0 : i32, i32
  }
  func.func @transform_2(%arg0: i32) -> (i32, i32) {
    %c0_i32 = arith.constant 0 : i32
    %c0_i32_0 = arith.constant 0 : i32
    %c0_i32_1 = arith.constant 0 : i32
    return %c0_i32, %c0_i32_0 : i32, i32
  }
  func.func @transform_3(%arg0: i32) -> (i32, i32) {
    %c0_i32 = arith.constant 0 : i32
    %c0_i32_0 = arith.constant 0 : i32
    %c0_i32_1 = arith.constant 0 : i32
    return %c0_i32, %c0_i32_0 : i32, i32
  }
}

</mosaic_0001>

<llo_original>
// kernel: embedding_forward.1
$region0: #{embedding_forward.1}
  #allocation0 [shape = 'u32[]', space=smem, size = 0x4, offset = 0x4, fixed_abs, tag = 'smem constant byte address 0x4 - core index']
  #allocation1 [shape = 'u32[72,128]{1,0:T(1,128)}', space=vmem, size = 0x9000, scoped, tag = 'internal scratch']
  %s0 = inlined_call_operand.vmem [shape: f32[8,128], index: 0, kind: input, shape index: {}]
  %s1 = inlined_call_operand.hbm [shape: bf16[128,128], index: 1, kind: input, shape index: {}]
  %s2 = inlined_call_operand.vmem [shape: f32[1,128], index: 2, kind: input, shape index: {}]
  %s3 = inlined_call_operand.hbm [shape: f32[8,128], index: 3, kind: output, shape index: {}]
  %s4 = sld [smem:[#allocation0]]
  $region26: #{embedding_forward.1} parent=0
    _
  %s6 = ssub.s32 1, %s4
  %s7 = scalar_select 0, %s6, %s4
  $region1: #{embedding_forward.1} parent=0
    #allocation2 [shape = 'u8[32768]{0}', space=vmem, size = 0x8000, scoped, tag = 'input window, operand 1, single buffered']
    #allocation3 [shape = 's32[1]{0}', space=sflag, size = 0x4, scoped, tag = 'scoped memory for embedding_forward.1']
    #allocation4 [shape = 's32[1]{0}', space=sflag, size = 0x4, scoped, tag = 'scoped memory for embedding_forward.1']
    #allocation5 [shape = 'u8[4096]{0}', space=vmem, size = 0x1000, scoped, tag = 'output window, operand 0, single buffered']
    %8 = vsyncpa [#allocation3], 0
    %9 = vsyncpa [#allocation4], 0
    // Predicated region
    $region2: #{embedding_forward.1} parent=1 // pred_check
      _
    $region3: #{embedding_forward.1} parent=1 // pred_check_branch
      %11 = sbr.rel (0) target = $region5
    $region4: #{embedding_forward.1} parent=1 // pred_region
      _
    $region5: #{embedding_forward.1} parent=1 // pred_fallthru
      _
    // Predicated region
    $region6: #{embedding_forward.1} parent=1 // pred_check
      _
    $region7: #{embedding_forward.1} parent=1 // pred_check_branch
      %13 = sbr.rel (0) target = $region9
    $region8: #{embedding_forward.1} parent=1 // pred_region
      %15 = vsyncadd [#allocation3], 0
      %s16 = sshll.u32 %s1, 4
      %s17 = int_to_ptr.hbm [resolvable:$true] %s16
      %s18 = sshll.u32 [#allocation2], 4
      %s19 = int_to_ptr.vmem [resolvable:$true] %s18
      %24 = dma.hbm_to_vmem [thread:$0]  %s17, 1024, %s19, [#allocation3], 64, 64, 4
    $region9: #{embedding_forward.1} parent=1 // pred_fallthru
      _
    // Predicated region
    $region10: #{embedding_forward.1} parent=1 // pred_check
      _
    $region11: #{embedding_forward.1} parent=1 // pred_check_branch
      %26 = sbr.rel (0) target = $region13
    $region12: #{embedding_forward.1} parent=1 // pred_region
      _
    $region13: #{embedding_forward.1} parent=1 // pred_fallthru
      _
    // Predicated region
    $region14: #{embedding_forward.1} parent=1 // pred_check
      _
    $region15: #{embedding_forward.1} parent=1 // pred_check_branch
      %28 = sbr.rel (0) target = $region17
    $region16: #{embedding_forward.1} parent=1 // pred_region
      %30 = dma.done [#allocation3], 1024
    $region17: #{embedding_forward.1} parent=1 // pred_fallthru
      _
    %v31 = vld [vmem:[%s0] sm:$0xff]
    %v32 = vpack.c.bf16 %v31, %v31
    %v33 = vld [vmem:[#allocation2] sm:$0xf]
    %v34 = vld [vmem:[#allocation2 + $0x4] sm:$0xf]
    %v35 = vld [vmem:[#allocation2 + $0x8] sm:$0xf]
    %v36 = vld [vmem:[#allocation2 + $0xc] sm:$0xf]
    %v37 = vld [vmem:[#allocation2 + $0x10] sm:$0xf]
    %v38 = vld [vmem:[#allocation2 + $0x14] sm:$0xf]
    %v39 = vld [vmem:[#allocation2 + $0x18] sm:$0xf]
    %v40 = vld [vmem:[#allocation2 + $0x1c] sm:$0xf]
    %v41 = vld [vmem:[#allocation2 + $0x20] sm:$0xf]
    %v42 = vld [vmem:[#allocation2 + $0x24] sm:$0xf]
    %v43 = vld [vmem:[#allocation2 + $0x28] sm:$0xf]
    %v44 = vld [vmem:[#allocation2 + $0x2c] sm:$0xf]
    %v45 = vld [vmem:[#allocation2 + $0x30] sm:$0xf]
    %v46 = vld [vmem:[#allocation2 + $0x34] sm:$0xf]
    %v47 = vld [vmem:[#allocation2 + $0x38] sm:$0xf]
    %v48 = vld [vmem:[#allocation2 + $0x3c] sm:$0xf]
    %v49 = vld [vmem:[%s2] sm:$0x1]
    %v51 = vperm.slane %v49, 0
    %v69 = vunpack.c.l.b16 %v33
    %v70 = vunpack.c.l.b16 %v34
    %v71 = vunpack.c.l.b16 %v35
    %v72 = vunpack.c.l.b16 %v36
    %v73 = vunpack.c.l.b16 %v37
    %v74 = vunpack.c.l.b16 %v38
    %v75 = vunpack.c.l.b16 %v39
    %v76 = vunpack.c.l.b16 %v40
    %v77 = vunpack.c.l.b16 %v41
    %v78 = vunpack.c.l.b16 %v42
    %v79 = vunpack.c.l.b16 %v43
    %v80 = vunpack.c.l.b16 %v44
    %v81 = vunpack.c.l.b16 %v45
    %v82 = vunpack.c.l.b16 %v46
    %v83 = vunpack.c.l.b16 %v47
    %v84 = vunpack.c.l.b16 %v48
    %v85 = vpack.c.b16 %v70, %v69
    %v86 = vpack.c.b16 %v72, %v71
    %v87 = vpack.c.b16 %v74, %v73
    %v88 = vpack.c.b16 %v76, %v75
    %v89 = vpack.c.b16 %v78, %v77
    %v90 = vpack.c.b16 %v80, %v79
    %v91 = vpack.c.b16 %v82, %v81
    %v92 = vpack.c.b16 %v84, %v83
    %101 = vmatpush.bf16.msra.mxu0 %v92
    %102 = vmatpush.bf16.msra.mxu0 %v91
    %103 = vmatpush.bf16.msra.mxu0 %v90
    %104 = vmatpush.bf16.msra.mxu0 %v89
    %105 = vmatpush.bf16.msra.mxu0 %v88
    %106 = vmatpush.bf16.msra.mxu0 %v87
    %107 = vmatpush.bf16.msra.mxu0 %v86
    %108 = vmatpush.bf16.msra.mxu0 %v85
    %109 = vmatmul.bf16.gmra.mxu0 %v32
    %v110 = vpop.f32.mrf.mxu0
    %v111 = vadd.f32 %v51, %v110
    %v112 = vpop.f32.mrf.mxu0
    %113 = vdwg.mxu0
    %114 = vst [vmem:[#allocation5] sm:$0xff] %v111
    // Predicated region
    $region18: #{embedding_forward.1} parent=1 // pred_check
      _
    $region19: #{embedding_forward.1} parent=1 // pred_check_branch
      %116 = sbr.rel (0) target = $region21
    $region20: #{embedding_forward.1} parent=1 // pred_region
      %118 = vsyncadd [#allocation4], 0
      %s120 = sshll.u32 [#allocation5], 4
      %s121 = int_to_ptr.vmem [resolvable:$true] %s120
      %s122 = sshll.u32 %s3, 4
      %s123 = int_to_ptr.hbm [resolvable:$true] %s122
      %125 = dma.vmem_to_hbm [thread:$0]  %s121, 128, %s123, [#allocation4]
    $region21: #{embedding_forward.1} parent=1 // pred_fallthru
      _
    // Predicated region
    $region22: #{embedding_forward.1} parent=1 // pred_check
      _
    $region23: #{embedding_forward.1} parent=1 // pred_check_branch
      %127 = sbr.rel (0) target = $region25
    $region24: #{embedding_forward.1} parent=1 // pred_region
      %129 = dma.done [#allocation4], 128
    $region25: #{embedding_forward.1} parent=1 // pred_fallthru
      _
    %130 = vsyncpa [#allocation3], 1
    %131 = vsyncpa [#allocation4], 1

</llo_original>
